<compile_context>
chip_gen: v6e
topology: v6e:2x2x1
jax: 0.10.0
libtpu: 0.0.40
codegen_flags: <defaults>
</compile_context>

<pallas_src>
import functools
import math

import jax
import jax.numpy as jnp
from jax.experimental import pallas as pl
from jax.experimental.pallas import tpu as pltpu


_VMEM_BUDGET_BYTES = 8 * 1024 * 1024  # total double-buffered working-set target


# ----------------------------- small helpers -----------------------------


def _normalize_indices(indices, d):
    """Mirror botorch.utils.transforms.normalize_indices."""
    if indices is None:
        return None
    normalized = []
    for i in indices:
        j = i + d if i < 0 else i
        if j < 0 or j >= d:
            raise ValueError(f"index {i} out of bounds for output dim of size {d}")
        normalized.append(int(j))
    return normalized


def _pad_to(v, q):
    return -(-int(v) // q) * q


def _block_vmem_bytes(tile_b, rows, m, itemsize=4):
    """VMEM footprint of a (tile_b, rows, m) f32 block incl. (8,128) padding."""
    return int(tile_b) * _pad_to(rows, 8) * _pad_to(m, 128) * itemsize


def _fused_tile_b(B, n, m, n_big_streams):
    """Batch tile for the fused training kernel; 0 if even one row won't fit."""
    per_row = _block_vmem_bytes(1, n, m)
    # double-buffered big streams + ~2 block-sized in-kernel f32 temporaries
    per_tile_b = (2 * n_big_streams + 2) * per_row
    if per_tile_b > _VMEM_BUDGET_BYTES:
        return 0
    return int(max(1, min(B, _VMEM_BUDGET_BYTES // per_tile_b)))


def _apply_tiles(B, n, m, n_big_streams):
    """(tile_b, tile_n) for the elementwise apply kernel (bytes-driven)."""
    per_block_budget = max(_VMEM_BUDGET_BYTES // (2 * n_big_streams + 1), 128 * 1024)
    row_bytes = _pad_to(m, 128) * 4
    rows_fit = max(per_block_budget // row_bytes, 8)
    if _pad_to(n, 8) <= rows_fit:
        tile_n = n  # full n -> no (8,128) divisibility constraint on this dim
        tile_b = int(max(1, min(B, rows_fit // max(_pad_to(n, 8), 1))))
    else:
        tile_b = 1
        tile_n = int(max((rows_fit // 8) * 8, 8))
    return tile_b, tile_n


def _stats_tiles(n, m):
    """Chunk length over n for the fallback reduction kernel."""
    per_block_budget = max(_VMEM_BUDGET_BYTES // 4, 128 * 1024)
    row_bytes = _pad_to(m, 128) * 4
    rows_fit = max((per_block_budget // row_bytes) // 8 * 8, 8)
    if rows_fit >= n:
        return n, False
    return int(rows_fit), (n % rows_fit) != 0


def _mask_unused_outputs(mean, std, outputs):
    """Zero-mean / unit-std for columns not in `outputs` (static column set)."""
    if outputs is None:
        return mean, std
    if len(outputs) == 0:
        return jnp.zeros_like(mean), jnp.ones_like(std)
    col = jax.lax.broadcasted_iota(jnp.int32, mean.shape, mean.ndim - 1)
    sel = functools.reduce(jnp.logical_or, [col == int(i) for i in outputs])
    return jnp.where(sel, mean, 0.0), jnp.where(sel, std, 1.0)


# ----------------------- fused training kernel -----------------------


def _fused_train_kernel(*refs, n, min_stdv, outputs, has_yvar):
    """Resident (tile_b, n, m) slab: two-pass mean/std + standardize + stats."""
    if has_yvar:
        y_ref, yvar_ref, o_ref, ovar_ref, stats_ref = refs
    else:
        y_ref, o_ref, stats_ref = refs
        yvar_ref = ovar_ref = None

    y = y_ref[...].astype(jnp.float32)                       # (tb, n, m)
    mean = jnp.sum(y, axis=1, keepdims=True) * (1.0 / n)     # (tb, 1, m)
    if n > 1:
        centered = y - mean
        var = jnp.sum(centered * centered, axis=1, keepdims=True) * (1.0 / (n - 1))
        std = jnp.sqrt(var)
        std = jnp.where(std >= min_stdv, std, 1.0)
    else:
        std = jnp.ones_like(mean)
    mean, std = _mask_unused_outputs(mean, std, outputs)
    inv_std = 1.0 / std

    o_ref[...] = ((y - mean) * inv_std).astype(o_ref.dtype)
    stats_ref[:, 0:1, :] = mean
    stats_ref[:, 1:2, :] = std
    stats_ref[:, 2:3, :] = std * std
    if has_yvar:
        inv_sq = inv_std * inv_std
        ovar_ref[...] = (yvar_ref[...].astype(jnp.float32) * inv_sq).astype(
            ovar_ref.dtype)


def _fused_train_call(y3, yvar3, *, min_stdv, outputs, tile_b, has_yvar):
    B, n, m = y3.shape
    grid = (pl.cdiv(B, tile_b),)
    big_spec = pl.BlockSpec((tile_b, n, m), lambda b: (b, 0, 0))
    stats_spec = pl.BlockSpec((tile_b, 3, m), lambda b: (b, 0, 0))

    kernel = functools.partial(
        _fused_train_kernel, n=n, min_stdv=min_stdv, outputs=outputs,
        has_yvar=has_yvar)

    if has_yvar:
        in_specs = [big_spec, big_spec]
        out_specs = (big_spec, big_spec, stats_spec)
        out_shape = (jax.ShapeDtypeStruct((B, n, m), y3.dtype),
                     jax.ShapeDtypeStruct((B, n, m), yvar3.dtype),
                     jax.ShapeDtypeStruct((B, 3, m), jnp.float32))
        args = (y3, yvar3)
    else:
        in_specs = [big_spec]
        out_specs = (big_spec, stats_spec)
        out_shape = (jax.ShapeDtypeStruct((B, n, m), y3.dtype),
                     jax.ShapeDtypeStruct((B, 3, m), jnp.float32))
        args = (y3,)

    out = pl.pallas_call(
        kernel, grid=grid, in_specs=in_specs, out_specs=out_specs,
        out_shape=out_shape,
        compiler_params=pltpu.CompilerParams(dimension_semantics=("parallel",)),
    )(*args)
    if has_yvar:
        y_tf3, yvar_tf3, stats = out
    else:
        y_tf3, stats = out
        yvar_tf3 = None
    return y_tf3, yvar_tf3, stats


# --------------------------- apply (affine) kernel ---------------------------


def _apply_kernel(*refs, has_yvar):
    """Elementwise (y - mean) * inv_std (and yvar * inv_std_sq)."""
    if has_yvar:
        y_ref, yvar_ref, aff_ref, o_ref, ovar_ref = refs
    else:
        y_ref, aff_ref, o_ref = refs
        yvar_ref = ovar_ref = None
    mean = aff_ref[:, 0:1, :]
    inv_std = aff_ref[:, 1:2, :]
    o_ref[...] = ((y_ref[...].astype(jnp.float32) - mean) * inv_std).astype(
        o_ref.dtype)
    if has_yvar:
        inv_sq = aff_ref[:, 2:3, :]
        ovar_ref[...] = (yvar_ref[...].astype(jnp.float32) * inv_sq).astype(
            ovar_ref.dtype)


def _apply_call(y3, yvar3, affine, *, has_yvar):
    B, n, m = y3.shape
    n_streams = 4 if has_yvar else 2
    tile_b, tile_n = _apply_tiles(B, n, m, n_streams)
    grid = (pl.cdiv(B, tile_b), pl.cdiv(n, tile_n))
    big_spec = pl.BlockSpec((tile_b, tile_n, m), lambda b, k: (b, k, 0))
    aff_spec = pl.BlockSpec((tile_b, 3, m), lambda b, k: (b, 0, 0))

    kernel = functools.partial(_apply_kernel, has_yvar=has_yvar)
    if has_yvar:
        in_specs = [big_spec, big_spec, aff_spec]
        out_specs = (big_spec, big_spec)
        out_shape = (jax.ShapeDtypeStruct((B, n, m), y3.dtype),
                     jax.ShapeDtypeStruct((B, n, m), yvar3.dtype))
        args = (y3, yvar3, affine)
    else:
        in_specs = [big_spec, aff_spec]
        out_specs = (big_spec,)
        out_shape = (jax.ShapeDtypeStruct((B, n, m), y3.dtype),)
        args = (y3, affine)

    out = pl.pallas_call(
        kernel, grid=grid, in_specs=in_specs, out_specs=out_specs,
        out_shape=out_shape,
        compiler_params=pltpu.CompilerParams(
            dimension_semantics=("parallel", "parallel")),
    )(*args)
    if has_yvar:
        return out[0], out[1]
    return out[0], None


# ----------------- fallback chunked reduction (very large n) -----------------


def _stats_chunk_kernel(y_ref, stats_ref, shift_ref, *, n, tile_n, min_stdv,
                        outputs, mask_tail):
    """Shift-stabilized sum / sum-of-squares accumulation over n chunks."""
    k = pl.program_id(1)

    @pl.when(k == 0)
    def _init():
        shift_ref[...] = y_ref[:, 0:1, :].astype(jnp.float32)
        stats_ref[...] = jnp.zeros_like(stats_ref)

    d = y_ref[...].astype(jnp.float32) - shift_ref[...]      # (1, tile_n, m)
    if mask_tail:
        row = jax.lax.broadcasted_iota(jnp.int32, d.shape, 1) + k * tile_n
        d = jnp.where(row < n, d, 0.0)
    stats_ref[:, 0:1, :] += jnp.sum(d, axis=1, keepdims=True)
    stats_ref[:, 1:2, :] += jnp.sum(d * d, axis=1, keepdims=True)

    @pl.when(k == pl.num_programs(1) - 1)
    def _finalize():
        s = stats_ref[:, 0:1, :]
        ss = stats_ref[:, 1:2, :]
        mean = shift_ref[...] + s * (1.0 / n)
        if n > 1:
            var = (ss - s * s * (1.0 / n)) * (1.0 / (n - 1))
            std = jnp.sqrt(jnp.maximum(var, 0.0))
            std = jnp.where(std >= min_stdv, std, 1.0)
        else:
            std = jnp.ones_like(mean)
        mean_f, std_f = _mask_unused_outputs(mean, std, outputs)
        stats_ref[:, 0:1, :] = mean_f
        stats_ref[:, 1:2, :] = std_f
        stats_ref[:, 2:3, :] = std_f * std_f


def _stats_chunk_call(y3, *, min_stdv, outputs):
    B, n, m = y3.shape
    tile_n, mask_tail = _stats_tiles(n, m)
    # TODO(synk): when B == 1 on v7x this reduction runs on a single TensorCore;
    # a per-core partial-sum split over n would feed both cores.
    kernel = functools.partial(
        _stats_chunk_kernel, n=n, tile_n=tile_n, min_stdv=min_stdv,
        outputs=outputs, mask_tail=mask_tail)
    return pl.pallas_call(
        kernel,
        grid=(B, pl.cdiv(n, tile_n)),
        in_specs=[pl.BlockSpec((1, tile_n, m), lambda b, k: (b, k, 0))],
        out_specs=pl.BlockSpec((1, 3, m), lambda b, k: (b, 0, 0)),
        out_shape=jax.ShapeDtypeStruct((B, 3, m), jnp.float32),
        scratch_shapes=[pltpu.VMEM((1, 1, m), jnp.float32)],
        compiler_params=pltpu.CompilerParams(
            dimension_semantics=("parallel", "arbitrary")),
    )(y3)


# ------------------------------ fused forward ------------------------------


@functools.partial(
    jax.jit,
    static_argnames=("m", "batch_shape", "min_stdv", "outputs", "training",
                     "has_yvar"),
)
def _standardize_forward(Y, Yvar, means, stdvs, stdvs_sq, *, m, batch_shape,
                         min_stdv, outputs, training, has_yvar):
    n = Y.shape[-2]
    lead = Y.shape[:-2]
    B = int(math.prod(lead)) if lead else 1
    # Contiguous reshapes only -- no transposes, no extra HBM traffic.
    y3 = Y.reshape(B, n, m)
    yvar3 = Yvar.reshape(B, n, m) if has_yvar else None

    if training:
        n_streams = 4 if has_yvar else 2
        tile_b = _fused_tile_b(B, n, m, n_streams)
        if tile_b > 0:
            y_tf3, yvar_tf3, stats = _fused_train_call(
                y3, yvar3, min_stdv=min_stdv, outputs=outputs,
                tile_b=tile_b, has_yvar=has_yvar)
        else:
            # Slab too large for VMEM: chunked reduction + shared apply kernel.
            stats = _stats_chunk_call(y3, min_stdv=min_stdv, outputs=outputs)
            affine = jnp.concatenate(
                [stats[:, 0:1, :], 1.0 / stats[:, 1:2, :], 1.0 / stats[:, 2:3, :]],
                axis=1)
            y_tf3, yvar_tf3 = _apply_call(y3, yvar3, affine, has_yvar=has_yvar)
        new_means = stats[:, 0:1, :].reshape(*batch_shape, 1, m)
        new_stdvs = stats[:, 1:2, :].reshape(*batch_shape, 1, m)
        new_stdvs_sq = stats[:, 2:3, :].reshape(*batch_shape, 1, m)
    else:
        # Eval: apply stored state (broadcast over extra leading sample dims).
        tgt = (*lead, 1, m)
        mean3 = jnp.broadcast_to(means.astype(jnp.float32), tgt).reshape(B, 1, m)
        std3 = jnp.broadcast_to(stdvs.astype(jnp.float32), tgt).reshape(B, 1, m)
        stdsq3 = jnp.broadcast_to(stdvs_sq.astype(jnp.float32), tgt).reshape(B, 1, m)
        affine = jnp.concatenate([mean3, 1.0 / std3, 1.0 / stdsq3], axis=1)
        y_tf3, yvar_tf3 = _apply_call(y3, yvar3, affine, has_yvar=has_yvar)
        new_means, new_stdvs, new_stdvs_sq = means, stdvs, stdvs_sq

    Y_tf = y_tf3.reshape(Y.shape)
    Yvar_tf = yvar_tf3.reshape(Yvar.shape) if has_yvar else None
    return Y_tf, Yvar_tf, new_means, new_stdvs, new_stdvs_sq


# ---------------------------------- module ----------------------------------


class StandardizePallas:
    """JAX/Pallas port of botorch's Standardize outcome transform (forward)."""

    def __init__(self, m, outputs=None, batch_shape=(), min_stdv=1e-8):
        self._m = int(m)
        idcs = _normalize_indices(outputs, d=self._m)
        self._outputs = tuple(sorted(set(idcs))) if idcs is not None else None
        self._batch_shape = tuple(int(s) for s in batch_shape)
        self._min_stdv = float(min_stdv)
        self.training = True
        self._is_trained = False
        # State stored in botorch layout: (*batch_shape, 1, m).
        self.means = jnp.zeros((*self._batch_shape, 1, self._m), dtype=jnp.float32)
        self.stdvs = jnp.ones((*self._batch_shape, 1, self._m), dtype=jnp.float32)
        self._stdvs_sq = jnp.ones((*self._batch_shape, 1, self._m), dtype=jnp.float32)

    def train(self):
        self.training = True
        return self

    def eval(self):
        self.training = False
        return self

    def _validate_training_inputs(self, Y, Yvar=None):
        if tuple(Y.shape[:-2]) != self._batch_shape:
            raise RuntimeError(
                f"Expected Y.shape[:-2] to be {self._batch_shape}, "
                f"got {tuple(Y.shape[:-2])}.")
        if Y.shape[-2] < 1:
            raise ValueError(
                f"Can't standardize with no observations. Y.shape={Y.shape!r}.")
        if Y.shape[-1] != self._m:
            raise RuntimeError(
                f"Wrong output dimension. Y.shape[-1] is {Y.shape[-1]}; "
                f"expected {self._m}.")

    def forward(self, Y, Yvar=None, X=None):
        if self.training:
            self._validate_training_inputs(Y=Y, Yvar=Yvar)
        has_yvar = Yvar is not None
        Y_tf, Yvar_tf, means, stdvs, stdvs_sq = _standardize_forward(
            Y, Yvar, self.means, self.stdvs, self._stdvs_sq,
            m=self._m, batch_shape=self._batch_shape, min_stdv=self._min_stdv,
            outputs=self._outputs, training=self.training, has_yvar=has_yvar)
        if self.training:
            self.means, self.stdvs, self._stdvs_sq = means, stdvs, stdvs_sq
            self._is_trained = True
        return Y_tf, (Yvar_tf if has_yvar else None)

    __call__ = forward


if __name__ == "__main__":
    key = jax.random.PRNGKey(0)
    batch_shape = (2,)
    n, m = 16, 4
    k1, k2, k3 = jax.random.split(key, 3)
    Y = jax.random.normal(k1, (*batch_shape, n, m), dtype=jnp.float32) * 2.0 + 0.5
    Yvar = jax.random.uniform(k2, (*batch_shape, n, m), dtype=jnp.float32) * 0.1 + 0.01

    # --- train mode, all outputs, with Yvar (fused kernel path) ---
    tf = StandardizePallas(m=m, batch_shape=batch_shape)
    Y_tf, Yvar_tf = tf(Y, Yvar)
    Y_tf = jax.block_until_ready(Y_tf)
    Yvar_tf = jax.block_until_ready(Yvar_tf)

    # plain-JAX reference
    means_ref = Y.mean(axis=-2, keepdims=True)
    stdvs_ref = Y.std(axis=-2, ddof=1, keepdims=True)
    stdvs_ref = jnp.where(stdvs_ref >= 1e-8, stdvs_ref, 1.0)
    Y_tf_ref = (Y - means_ref) / stdvs_ref
    Yvar_tf_ref = Yvar / (stdvs_ref ** 2)

    assert Y_tf.shape == Y.shape and Y_tf.dtype == Y.dtype
    assert jnp.allclose(Y_tf, Y_tf_ref, atol=1e-5, rtol=1e-4)
    assert jnp.allclose(Yvar_tf, Yvar_tf_ref, atol=1e-5, rtol=1e-4)
    assert jnp.allclose(tf.means, means_ref, atol=1e-5, rtol=1e-4)
    assert jnp.allclose(tf.stdvs, stdvs_ref, atol=1e-5, rtol=1e-4)

    # --- eval mode: stored stats applied to new data (extra sample dim) ---
    tf.eval()
    Y_new = jax.random.normal(k3, (3, *batch_shape, n, m), dtype=jnp.float32)
    Y_new_tf, none_var = tf(Y_new)
    Y_new_tf = jax.block_until_ready(Y_new_tf)
    assert none_var is None
    assert jnp.allclose(Y_new_tf, (Y_new - means_ref) / stdvs_ref,
                        atol=1e-5, rtol=1e-4)

    # --- subset of outputs: columns 1 and 3 pass through unchanged ---
    tf_sub = StandardizePallas(m=m, outputs=[0, 2], batch_shape=batch_shape)
    Y_tf_sub, _ = tf_sub(Y)
    Y_tf_sub = jax.block_until_ready(Y_tf_sub)
    means_sub = means_ref.at[..., 1].set(0.0).at[..., 3].set(0.0)
    stdvs_sub = stdvs_ref.at[..., 1].set(1.0).at[..., 3].set(1.0)
    assert jnp.allclose(Y_tf_sub, (Y - means_sub) / stdvs_sub, atol=1e-5, rtol=1e-4)

    # --- unbatched case (batch_shape == ()) ---
    tf0 = StandardizePallas(m=m)
    Y0 = Y[0]
    Y0_tf, _ = tf0(Y0)
    Y0_tf = jax.block_until_ready(Y0_tf)
    m0 = Y0.mean(axis=-2, keepdims=True)
    s0 = Y0.std(axis=-2, ddof=1, keepdims=True)
    assert jnp.allclose(Y0_tf, (Y0 - m0) / s0, atol=1e-5, rtol=1e-4)

    print("KERNEL_OK")
</pallas_src>

<mosaic_0001>
module attributes {stable_mosaic.version = 11 : i64} {
  func.func @_fused_train_kernel(%arg0: i32, %arg1: memref<2x16x4xf32, #tpu.memory_space<vmem>>, %arg2: memref<2x16x4xf32, #tpu.memory_space<vmem>>, %arg3: memref<2x16x4xf32, #tpu.memory_space<vmem>>, %arg4: memref<2x16x4xf32, #tpu.memory_space<vmem>>, %arg5: memref<2x3x4xf32, #tpu.memory_space<vmem>>) attributes {dimension_semantics = [#tpu.dimension_semantics<parallel>], iteration_bounds = array<i64: 1>, scalar_prefetch = 0 : i64, scratch_operands = 0 : i64, tpu.core_type = #tpu.core_type<tc>, window_params = [{transform_indices = @transform_0, window_bounds = array<i64: 2, 16, 4>}, {transform_indices = @transform_1, window_bounds = array<i64: 2, 16, 4>}, {transform_indices = @transform_2, window_bounds = array<i64: 2, 16, 4>}, {transform_indices = @transform_3, window_bounds = array<i64: 2, 16, 4>}, {transform_indices = @transform_4, window_bounds = array<i64: 2, 3, 4>}]} {
    %c0 = arith.constant 0 : index
    %c0_0 = arith.constant 0 : index
    %c0_1 = arith.constant 0 : index
    %0 = vector.load %arg1[%c0, %c0_0, %c0_1] : memref<2x16x4xf32, #tpu.memory_space<vmem>>, vector<2x16x4xf32>
    %cst = arith.constant dense<0.000000e+00> : vector<2x4xf32>
    %1 = vector.multi_reduction <add>, %0, %cst [1] : vector<2x16x4xf32> to vector<2x4xf32>
    %2 = vector.shape_cast %1 : vector<2x4xf32> to vector<2x1x4xf32>
    %cst_2 = arith.constant 6.250000e-02 : f32
    %3 = vector.broadcast %cst_2 : f32 to vector<2x1x4xf32>
    %4 = arith.mulf %2, %3 : vector<2x1x4xf32>
    %5 = vector.broadcast %4 : vector<2x1x4xf32> to vector<2x16x4xf32>
    %6 = arith.subf %0, %5 : vector<2x16x4xf32>
    %7 = arith.mulf %6, %6 : vector<2x16x4xf32>
    %cst_3 = arith.constant dense<0.000000e+00> : vector<2x4xf32>
    %8 = vector.multi_reduction <add>, %7, %cst_3 [1] : vector<2x16x4xf32> to vector<2x4xf32>
    %9 = vector.shape_cast %8 : vector<2x4xf32> to vector<2x1x4xf32>
    %cst_4 = arith.constant 0.0666666701 : f32
    %10 = vector.broadcast %cst_4 : f32 to vector<2x1x4xf32>
    %11 = arith.mulf %9, %10 : vector<2x1x4xf32>
    %12 = math.sqrt %11 : vector<2x1x4xf32>
    %cst_5 = arith.constant 9.99999993E-9 : f32
    %13 = vector.broadcast %cst_5 : f32 to vector<2x1x4xf32>
    %14 = arith.cmpf oge, %12, %13 : vector<2x1x4xf32>
    %cst_6 = arith.constant 1.000000e+00 : f32
    %15 = vector.broadcast %cst_6 : f32 to vector<2x1x4xf32>
    %16 = arith.select %14, %12, %15 : vector<2x1x4xi1>, vector<2x1x4xf32>
    %cst_7 = arith.constant 1.000000e+00 : f32
    %17 = vector.broadcast %cst_7 : f32 to vector<2x1x4xf32>
    %18 = arith.divf %17, %16 : vector<2x1x4xf32>
    %19 = vector.broadcast %4 : vector<2x1x4xf32> to vector<2x16x4xf32>
    %20 = arith.subf %0, %19 : vector<2x16x4xf32>
    %21 = vector.broadcast %18 : vector<2x1x4xf32> to vector<2x16x4xf32>
    %22 = arith.mulf %20, %21 : vector<2x16x4xf32>
    %c0_8 = arith.constant 0 : index
    %c0_9 = arith.constant 0 : index
    %c0_10 = arith.constant 0 : index
    %23 = vector.load %arg3[%c0_8, %c0_9, %c0_10] : memref<2x16x4xf32, #tpu.memory_space<vmem>>, vector<2x16x4xf32>
    tpu.vector_store %arg3[%c0_8, %c0_9, %c0_10], %22 {strides = array<i32>} : memref<2x16x4xf32, #tpu.memory_space<vmem>>, vector<2x16x4xf32>,
    %c0_11 = arith.constant 0 : index
    %c0_12 = arith.constant 0 : index
    %c0_13 = arith.constant 0 : index
    %24 = vector.load %arg5[%c0_11, %c0_12, %c0_13] : memref<2x3x4xf32, #tpu.memory_space<vmem>>, vector<2x1x4xf32>
    tpu.vector_store %arg5[%c0_11, %c0_12, %c0_13], %4 {strides = array<i32>} : memref<2x3x4xf32, #tpu.memory_space<vmem>>, vector<2x1x4xf32>,
    %c0_14 = arith.constant 0 : index
    %c1 = arith.constant 1 : index
    %c0_15 = arith.constant 0 : index
    %25 = vector.load %arg5[%c0_14, %c1, %c0_15] : memref<2x3x4xf32, #tpu.memory_space<vmem>>, vector<2x1x4xf32>
    tpu.vector_store %arg5[%c0_14, %c1, %c0_15], %16 {strides = array<i32>} : memref<2x3x4xf32, #tpu.memory_space<vmem>>, vector<2x1x4xf32>,
    %26 = arith.mulf %16, %16 : vector<2x1x4xf32>
    %c0_16 = arith.constant 0 : index
    %c2 = arith.constant 2 : index
    %c0_17 = arith.constant 0 : index
    %27 = vector.load %arg5[%c0_16, %c2, %c0_17] : memref<2x3x4xf32, #tpu.memory_space<vmem>>, vector<2x1x4xf32>
    tpu.vector_store %arg5[%c0_16, %c2, %c0_17], %26 {strides = array<i32>} : memref<2x3x4xf32, #tpu.memory_space<vmem>>, vector<2x1x4xf32>,
    %28 = arith.mulf %18, %18 : vector<2x1x4xf32>
    %c0_18 = arith.constant 0 : index
    %c0_19 = arith.constant 0 : index
    %c0_20 = arith.constant 0 : index
    %29 = vector.load %arg2[%c0_18, %c0_19, %c0_20] : memref<2x16x4xf32, #tpu.memory_space<vmem>>, vector<2x16x4xf32>
    %30 = vector.broadcast %28 : vector<2x1x4xf32> to vector<2x16x4xf32>
    %31 = arith.mulf %29, %30 : vector<2x16x4xf32>
    %c0_21 = arith.constant 0 : index
    %c0_22 = arith.constant 0 : index
    %c0_23 = arith.constant 0 : index
    %32 = vector.load %arg4[%c0_21, %c0_22, %c0_23] : memref<2x16x4xf32, #tpu.memory_space<vmem>>, vector<2x16x4xf32>
    tpu.vector_store %arg4[%c0_21, %c0_22, %c0_23], %31 {strides = array<i32>} : memref<2x16x4xf32, #tpu.memory_space<vmem>>, vector<2x16x4xf32>,
    return
  }
  func.func @transform_0(%arg0: i32) -> (i32, i32, i32) {
    %c0_i32 = arith.constant 0 : i32
    %c0_i32_0 = arith.constant 0 : i32
    %c0_i32_1 = arith.constant 0 : i32
    return %arg0, %c0_i32, %c0_i32_0 : i32, i32, i32
  }
  func.func @transform_1(%arg0: i32) -> (i32, i32, i32) {
    %c0_i32 = arith.constant 0 : i32
    %c0_i32_0 = arith.constant 0 : i32
    %c0_i32_1 = arith.constant 0 : i32
    return %arg0, %c0_i32, %c0_i32_0 : i32, i32, i32
  }
  func.func @transform_2(%arg0: i32) -> (i32, i32, i32) {
    %c0_i32 = arith.constant 0 : i32
    %c0_i32_0 = arith.constant 0 : i32
    %c0_i32_1 = arith.constant 0 : i32
    return %arg0, %c0_i32, %c0_i32_0 : i32, i32, i32
  }
  func.func @transform_3(%arg0: i32) -> (i32, i32, i32) {
    %c0_i32 = arith.constant 0 : i32
    %c0_i32_0 = arith.constant 0 : i32
    %c0_i32_1 = arith.constant 0 : i32
    return %arg0, %c0_i32, %c0_i32_0 : i32, i32, i32
  }
  func.func @transform_4(%arg0: i32) -> (i32, i32, i32) {
    %c0_i32 = arith.constant 0 : i32
    %c0_i32_0 = arith.constant 0 : i32
    %c0_i32_1 = arith.constant 0 : i32
    return %arg0, %c0_i32, %c0_i32_0 : i32, i32, i32
  }
}

</mosaic_0001>

<llo_original>
// kernel: _standardize_forward.1
$region0: #{_standardize_forward.1}
  #allocation0 [shape = 'u32[]', space=smem, size = 0x4, offset = 0x4, fixed_abs, tag = 'smem constant byte address 0x4 - core index']
  #allocation1 [shape = 'u32[144,128]{1,0:T(1,128)}', space=vmem, size = 0x12000, scoped, tag = 'internal scratch']
  %s0 = inlined_call_operand.vmem [shape: f32[2,16,4], index: 0, kind: input, shape index: {}]
  %s1 = inlined_call_operand.vmem [shape: f32[2,16,4], index: 1, kind: input, shape index: {}]
  %s2 = inlined_call_operand.vmem [shape: f32[2,16,4], index: 2, kind: output, shape index: {0}]
  %s3 = inlined_call_operand.vmem [shape: f32[2,16,4], index: 3, kind: output, shape index: {1}]
  %s4 = inlined_call_operand.vmem [shape: f32[2,3,4], index: 4, kind: output, shape index: {2}]
  %5 = xla_tuple %s2, %s3, %s4
  %s6 = sld [smem:[#allocation0]]
  $region34: #{_standardize_forward.1} parent=0
    _
  %s8 = ssub.s32 1, %s6
  %s9 = scalar_select 0, %s8, %s6
  // Predicated region
  $region2: #{_standardize_forward.1} parent=0 // pred_check
    _
  $region3: #{_standardize_forward.1} parent=0 // pred_check_branch
    %11 = sbr.rel (0) target = $region5
  $region4: #{_standardize_forward.1} parent=0 // pred_region
    _
  $region5: #{_standardize_forward.1} parent=0 // pred_fallthru
    _
  // Predicated region
  $region6: #{_standardize_forward.1} parent=0 // pred_check
    _
  $region7: #{_standardize_forward.1} parent=0 // pred_check_branch
    %13 = sbr.rel (0) target = $region9
  $region8: #{_standardize_forward.1} parent=0 // pred_region
    _
  $region9: #{_standardize_forward.1} parent=0 // pred_fallthru
    _
  %v14 = vld [vmem:[%s0] sm:$0xff]
  %v15 = vld [vmem:[%s0 + $0x8] sm:$0xff]
  %v16 = vld [vmem:[%s0 + $0x10] sm:$0xff]
  %v17 = vld [vmem:[%s0 + $0x18] sm:$0xff]
  %vm18 = vcmask 31744
  %v19 = vsel %vm18, %v14, 0.0
  %v20 = vsel %vm18, %v15, 0.0
  %v21 = vadd.f32 %v19, %v20
  %v22 = vrot.slane %v21, 4
  %v23 = vadd.f32 %v21, %v22
  %v24 = vrot.slane %v23, 2
  %v25 = vadd.f32 %v23, %v24
  %v26 = vrot.slane %v25, 1
  %v27 = vadd.f32 %v25, %v26
  %v28 = vsel %vm18, %v16, 0.0
  %v29 = vsel %vm18, %v17, 0.0
  %v30 = vadd.f32 %v28, %v29
  %v31 = vrot.slane %v30, 4
  %v32 = vadd.f32 %v30, %v31
  %v33 = vrot.slane %v32, 2
  %v34 = vadd.f32 %v32, %v33
  %v35 = vrot.slane %v34, 1
  %v36 = vadd.f32 %v34, %v35
  %v37 = vmul.f32 %v27, 0.0625
  %v38 = vmul.f32 %v36, 0.0625
  %v39 = vsub.f32 %v14, %v37
  %v40 = vsub.f32 %v15, %v37
  %v41 = vsub.f32 %v16, %v38
  %v42 = vsub.f32 %v17, %v38
  %v43 = vmul.f32 %v39, %v39
  %v44 = vmul.f32 %v40, %v40
  %v45 = vmul.f32 %v41, %v41
  %v46 = vmul.f32 %v42, %v42
  %v47 = vsel %vm18, %v43, 0.0
  %v48 = vsel %vm18, %v44, 0.0
  %v49 = vadd.f32 %v47, %v48
  %v50 = vrot.slane %v49, 4
  %v51 = vadd.f32 %v49, %v50
  %v52 = vrot.slane %v51, 2
  %v53 = vadd.f32 %v51, %v52
  %v54 = vrot.slane %v53, 1
  %v55 = vadd.f32 %v53, %v54
  %v56 = vsel %vm18, %v45, 0.0
  %v57 = vsel %vm18, %v46, 0.0
  %v58 = vadd.f32 %v56, %v57
  %v59 = vrot.slane %v58, 4
  %v60 = vadd.f32 %v58, %v59
  %v61 = vrot.slane %v60, 2
  %v62 = vadd.f32 %v60, %v61
  %v63 = vrot.slane %v62, 1
  %v64 = vadd.f32 %v62, %v63
  %v65 = vmul.f32 %v55, 0.06666667
  %v66 = vmul.f32 %v64, 0.06666667
  %v67 = vrsqrt.pop %v65
  %v68 = vmul.f32 %v65, %v67
  %vm69 = vcmp.eq.f32.partialorder %v65, inf
  %v70 = vsel %vm69, %v65, %v68
  %vm71 = vcmp.eq.f32.partialorder %v65, 0.0
  %v72 = vand.u32 %v65, 2147483648
  %v73 = vsel %vm71, %v72, %v70
  %v74 = vrsqrt.pop %v66
  %v75 = vmul.f32 %v66, %v74
  %vm76 = vcmp.eq.f32.partialorder %v66, inf
  %v77 = vsel %vm76, %v66, %v75
  %vm78 = vcmp.eq.f32.partialorder %v66, 0.0
  %v79 = vand.u32 %v66, 2147483648
  %v80 = vsel %vm78, %v79, %v77
  %vm81 = vcmp.ge.f32.partialorder %v73, 1e-08
  %vm82 = vcmp.ge.f32.partialorder %v80, 1e-08
  %v83 = vsel %vm81, %v73, 1.0
  %v84 = vsel %vm82, %v80, 1.0
  %v85 = vrcp.pop %v83
  %v86 = vmul.f32 1.0, %v85
  %v87 = vrcp.pop %v84
  %v88 = vmul.f32 1.0, %v87
  %v89 = vmul.f32 %v39, %v86
  %v90 = vmul.f32 %v40, %v86
  %v91 = vmul.f32 %v41, %v88
  %v92 = vmul.f32 %v42, %v88
  %93 = vst.msk [vmem:[%s2] sm:$0xff] %vm18, %v89
  %94 = vst.msk [vmem:[%s2 + $0x8] sm:$0xff] %vm18, %v90
  %95 = vst.msk [vmem:[%s2 + $0x10] sm:$0xff] %vm18, %v91
  %96 = vst.msk [vmem:[%s2 + $0x18] sm:$0xff] %vm18, %v92
  %vm97 = vcmask 24576
  %98 = vst.msk [vmem:[%s4] sm:$0x1] %vm97, %v37
  %99 = vst.msk [vmem:[%s4 + $0x4] sm:$0x1] %vm97, %v38
  %100 = vst.msk [vmem:[%s4 + $0x1] sm:$0x1] %vm97, %v83
  %101 = vst.msk [vmem:[%s4 + $0x5] sm:$0x1] %vm97, %v84
  %v102 = vmul.f32 %v83, %v83
  %v103 = vmul.f32 %v84, %v84
  %104 = vst.msk [vmem:[%s4 + $0x2] sm:$0x1] %vm97, %v102
  %105 = vst.msk [vmem:[%s4 + $0x6] sm:$0x1] %vm97, %v103
  %v106 = vmul.f32 %v86, %v86
  %v107 = vmul.f32 %v88, %v88
  %v108 = vld [vmem:[%s1] sm:$0xff]
  %v109 = vld [vmem:[%s1 + $0x8] sm:$0xff]
  %v110 = vld [vmem:[%s1 + $0x10] sm:$0xff]
  %v111 = vld [vmem:[%s1 + $0x18] sm:$0xff]
  %v112 = vmul.f32 %v108, %v106
  %v113 = vmul.f32 %v109, %v106
  %v114 = vmul.f32 %v110, %v107
  %v115 = vmul.f32 %v111, %v107
  %116 = vst.msk [vmem:[%s3] sm:$0xff] %vm18, %v112
  %117 = vst.msk [vmem:[%s3 + $0x8] sm:$0xff] %vm18, %v113
  %118 = vst.msk [vmem:[%s3 + $0x10] sm:$0xff] %vm18, %v114
  %119 = vst.msk [vmem:[%s3 + $0x18] sm:$0xff] %vm18, %v115
  // Predicated region
  $region10: #{_standardize_forward.1} parent=0 // pred_check
    _
  $region11: #{_standardize_forward.1} parent=0 // pred_check_branch
    %121 = sbr.rel (0) target = $region13
  $region12: #{_standardize_forward.1} parent=0 // pred_region
    _
  $region13: #{_standardize_forward.1} parent=0 // pred_fallthru
    _
  // Predicated region
  $region14: #{_standardize_forward.1} parent=0 // pred_check
    _
  $region15: #{_standardize_forward.1} parent=0 // pred_check_branch
    %123 = sbr.rel (0) target = $region17
  $region16: #{_standardize_forward.1} parent=0 // pred_region
    _
  $region17: #{_standardize_forward.1} parent=0 // pred_fallthru
    _
  // Predicated region
  $region18: #{_standardize_forward.1} parent=0 // pred_check
    _
  $region19: #{_standardize_forward.1} parent=0 // pred_check_branch
    %125 = sbr.rel (0) target = $region21
  $region20: #{_standardize_forward.1} parent=0 // pred_region
    _
  $region21: #{_standardize_forward.1} parent=0 // pred_fallthru
    _
  // Predicated region
  $region22: #{_standardize_forward.1} parent=0 // pred_check
    _
  $region23: #{_standardize_forward.1} parent=0 // pred_check_branch
    %127 = sbr.rel (0) target = $region25
  $region24: #{_standardize_forward.1} parent=0 // pred_region
    _
  $region25: #{_standardize_forward.1} parent=0 // pred_fallthru
    _
  // Predicated region
  $region26: #{_standardize_forward.1} parent=0 // pred_check
    _
  $region27: #{_standardize_forward.1} parent=0 // pred_check_branch
    %129 = sbr.rel (0) target = $region29
  $region28: #{_standardize_forward.1} parent=0 // pred_region
    _
  $region29: #{_standardize_forward.1} parent=0 // pred_fallthru
    _
  // Predicated region
  $region30: #{_standardize_forward.1} parent=0 // pred_check
    _
  $region31: #{_standardize_forward.1} parent=0 // pred_check_branch
    %131 = sbr.rel (0) target = $region33
  $region32: #{_standardize_forward.1} parent=0 // pred_region
    _
  $region33: #{_standardize_forward.1} parent=0 // pred_fallthru
    _

</llo_original>
